<compile_context>
chip_gen: v7x
topology: tpu7x:2x2x1
jax: 0.10.0
libtpu: 0.0.40
codegen_flags: <defaults>
</compile_context>

<pallas_src>
import functools

import jax
import jax.numpy as jnp
from jax import lax
from jax.experimental import pallas as pl
from jax.experimental.pallas import tpu as pltpu

_ACC_W = 512          # fixed accumulator lane width (decoupled from tile width)
_MAX_TILE_S = 16384   # lane-tile cap (bounds in-kernel unroll / compile size)

# Test hooks (main uses these to exercise multi-tile / split / overflow paths
# on any chip without needing multi-million-voxel inputs).
_FORCE_TILE_S = None
_FORCE_SPLITS = None


def _round_up(v, m):
    return ((v + m - 1) // m) * m


def _num_parallel_cores():
    """2 for chips whose grid is sharded over 2 TensorCores (v4/v5p/v7x), else 1."""
    try:
        kind = jax.devices()[0].device_kind.lower()
    except Exception:
        return 1
    return 2 if any(t in kind for t in ("v4", "v5p", "v7")) else 1


def _vmem_limit_bytes():
    """Generation-aware scoped-VMEM limit: half of physical, capped at 64 MiB."""
    cap = None
    try:
        info = pltpu.get_tpu_info()
        for name in ("vmem_capacity_bytes", "vmem_size_bytes", "vmem_bytes"):
            v = getattr(info, name, None)
            if v:
                cap = int(v)
                break
    except Exception:
        cap = None
    if cap is None:
        try:
            kind = jax.devices()[0].device_kind.lower()
        except Exception:
            kind = ""
        cap = 64 * 1024 * 1024 if "v7" in kind else 128 * 1024 * 1024
    return max(32 * 1024 * 1024, min(cap // 2, 64 * 1024 * 1024))


def _compiler_params():
    return pltpu.CompilerParams(
        dimension_semantics=("parallel", "arbitrary"),
        vmem_limit_bytes=_vmem_limit_bytes(),
    )


def _pick_tile_s(S, bytes_per_col, fixed_bytes):
    """Largest lane tile (multiple of 512, <= 16384) fitting ~70% of the VMEM limit."""
    if _FORCE_TILE_S is not None:
        return max(_ACC_W, min(int(_FORCE_TILE_S), _round_up(S, _ACC_W)))
    budget = int(_vmem_limit_bytes() * 0.70) - fixed_bytes
    tile = max(_ACC_W, (budget // max(bytes_per_col, 1)) // _ACC_W * _ACC_W)
    return min(tile, _MAX_TILE_S, _round_up(S, _ACC_W))


def _grid_params(S, tile_s):
    n_total = pl.cdiv(S, tile_s)
    req = _FORCE_SPLITS if _FORCE_SPLITS is not None else _num_parallel_cores()
    n_splits = max(1, min(int(req), n_total))
    n_per = pl.cdiv(n_total, n_splits)
    rem = S - (n_total - 1) * tile_s            # valid lanes in the last real tile
    has_overflow = n_splits * n_per > n_total   # clamped duplicate tiles exist
    return n_total, n_splits, n_per, rem, has_overflow


# ---------------------------------------------------------------------------
# Path 1: ground truth already has the same shape as x (one-hot / soft labels)
# ---------------------------------------------------------------------------
def _dice_sums_kernel(x_ref, y_ref, out_ref, tp_acc, sx_acc, sy_acc, *,
                      tile_s, n_per, n_total, rem, has_overflow):
    p = pl.program_id(0)          # parallel half of the reduction
    k = pl.program_id(1)          # lane tile within this half (sequential)

    @pl.when(k == 0)
    def _():
        tp_acc[...] = jnp.zeros_like(tp_acc)
        sx_acc[...] = jnp.zeros_like(sx_acc)
        sy_acc[...] = jnp.zeros_like(sy_acc)

    t = p * n_per + k             # global lane-tile index
    n_chunks = tile_s // _ACC_W

    def accumulate(valid_lanes):
        # valid_lanes is a static Python int -> static per-chunk decisions.
        tp_c = tp_acc[...]
        sx_c = sx_acc[...]
        sy_c = sy_acc[...]
        for c in range(n_chunks):
            lo = c * _ACC_W
            if lo >= valid_lanes:
                break
            xc = x_ref[:, lo:lo + _ACC_W].astype(jnp.float32)
            yc = y_ref[:, lo:lo + _ACC_W].astype(jnp.float32)
            if lo + _ACC_W > valid_lanes:       # single partially-valid edge chunk
                pos = lax.broadcasted_iota(jnp.int32, xc.shape, 1) + lo
                ok = pos < valid_lanes
                xc = jnp.where(ok, xc, 0.0)
                yc = jnp.where(ok, yc, 0.0)
            tp_c = tp_c + xc * yc
            sx_c = sx_c + xc
            sy_c = sy_c + yc
        tp_acc[...] = tp_c
        sx_acc[...] = sx_c
        sy_acc[...] = sy_c

    if rem != tile_s:             # ragged last tile: mask only where needed
        pl.when(t == n_total - 1)(lambda: accumulate(rem))
        pl.when(t < n_total - 1)(lambda: accumulate(tile_s))
    elif has_overflow:            # skip clamped duplicate tiles entirely
        pl.when(t < n_total)(lambda: accumulate(tile_s))
    else:
        accumulate(tile_s)

    @pl.when(k == n_per - 1)
    def _():
        out_ref[0, 0] = jnp.sum(tp_acc[...], axis=-1, keepdims=True)
        out_ref[0, 1] = jnp.sum(sx_acc[...], axis=-1, keepdims=True)
        out_ref[0, 2] = jnp.sum(sy_acc[...], axis=-1, keepdims=True)


def _dice_sums_dense(x2d, y2d):
    """x2d, y2d: (R, S) in their native dtype. Returns tp, sx, sy of shape (R,)."""
    R, S = x2d.shape
    # 2x double-buffered input streams per lane column; fixed-width f32 scratch.
    bytes_per_col = R * 2 * (x2d.dtype.itemsize + y2d.dtype.itemsize)
    fixed = 3 * R * _ACC_W * 4 + (64 << 10)
    tile_s = _pick_tile_s(S, bytes_per_col, fixed)
    n_total, n_splits, n_per, rem, has_overflow = _grid_params(S, tile_s)

    def in_map(p, k):
        # Clamp: an out-of-range tile re-reads the last block; the kernel skips it.
        return (0, jnp.minimum(p * n_per + k, n_total - 1))

    kernel = functools.partial(_dice_sums_kernel, tile_s=tile_s, n_per=n_per,
                               n_total=n_total, rem=rem, has_overflow=has_overflow)

    out = pl.pallas_call(
        kernel,
        out_shape=jax.ShapeDtypeStruct((n_splits, 3, R, 1), jnp.float32),
        grid_spec=pltpu.PrefetchScalarGridSpec(
            num_scalar_prefetch=0,
            grid=(n_splits, n_per),
            in_specs=[pl.BlockSpec((R, tile_s), in_map),
                      pl.BlockSpec((R, tile_s), in_map)],
            out_specs=pl.BlockSpec((1, 3, R, 1), lambda p, k: (p, 0, 0, 0)),
            scratch_shapes=[pltpu.VMEM((R, _ACC_W), jnp.float32)] * 3,
        ),
        compiler_params=_compiler_params(),
    )(x2d, y2d)

    sums = out.sum(axis=0)        # (3, R, 1) partials over splits
    return sums[0, :, 0], sums[1, :, 0], sums[2, :, 0]


# ---------------------------------------------------------------------------
# Path 2: ground truth is an integer label map -> one-hot built inside the kernel
# ---------------------------------------------------------------------------
def _dice_sums_label_kernel(x_ref, lab_ref, out_ref, tp_acc, sx_acc, sy_acc, *,
                            tile_s, n_per, n_total, rem, has_overflow):
    p = pl.program_id(0)
    k = pl.program_id(1)

    @pl.when(k == 0)
    def _():
        tp_acc[...] = jnp.zeros_like(tp_acc)
        sx_acc[...] = jnp.zeros_like(sx_acc)
        sy_acc[...] = jnp.zeros_like(sy_acc)

    t = p * n_per + k
    n_chunks = tile_s // _ACC_W

    def accumulate(valid_lanes):
        tp_c = tp_acc[...]
        sx_c = sx_acc[...]
        sy_c = sy_acc[...]
        for c in range(n_chunks):
            lo = c * _ACC_W
            if lo >= valid_lanes:
                break
            xc = x_ref[:, :, lo:lo + _ACC_W].astype(jnp.float32)     # (B, C, W)
            lab = lab_ref[:, lo:lo + _ACC_W].astype(jnp.int32)       # (B, W)
            ch = lax.broadcasted_iota(jnp.int32, xc.shape, 1)        # channel index
            oh = lab[:, None, :] == ch                               # one-hot on the fly
            if lo + _ACC_W > valid_lanes:
                pos = lax.broadcasted_iota(jnp.int32, xc.shape, 2) + lo
                ok = pos < valid_lanes
                xc = jnp.where(ok, xc, 0.0)
                oh = jnp.logical_and(oh, ok)
            tp_c = tp_c + jnp.where(oh, xc, 0.0)                     # no f32 one-hot temp
            sx_c = sx_c + xc
            sy_c = sy_c + jnp.where(oh, 1.0, 0.0)
        tp_acc[...] = tp_c
        sx_acc[...] = sx_c
        sy_acc[...] = sy_c

    if rem != tile_s:
        pl.when(t == n_total - 1)(lambda: accumulate(rem))
        pl.when(t < n_total - 1)(lambda: accumulate(tile_s))
    elif has_overflow:
        pl.when(t < n_total)(lambda: accumulate(tile_s))
    else:
        accumulate(tile_s)

    @pl.when(k == n_per - 1)
    def _():
        out_ref[0, 0] = jnp.sum(tp_acc[...], axis=-1)
        out_ref[0, 1] = jnp.sum(sx_acc[...], axis=-1)
        out_ref[0, 2] = jnp.sum(sy_acc[...], axis=-1)


def _dice_sums_from_labels(x3, labels2):
    """x3: (B, C, S) probs, labels2: (B, S) integer labels in [0, C)."""
    B, C, S = x3.shape
    # TODO(synk): out-of-range "ignore" labels (e.g. 255) silently yield an
    # all-zero one-hot instead of erroring like torch scatter_.
    lab_dtype = jnp.int8 if C <= 127 else jnp.int32   # labels are pure HBM traffic
    labels2 = labels2.astype(lab_dtype)
    bytes_per_col = 2 * (B * C * x3.dtype.itemsize
                         + B * jnp.dtype(lab_dtype).itemsize)
    fixed = 3 * B * C * _ACC_W * 4 + (64 << 10)
    tile_s = _pick_tile_s(S, bytes_per_col, fixed)
    n_total, n_splits, n_per, rem, has_overflow = _grid_params(S, tile_s)

    def x_map(p, k):
        return (0, 0, jnp.minimum(p * n_per + k, n_total - 1))

    def lab_map(p, k):
        return (0, jnp.minimum(p * n_per + k, n_total - 1))

    kernel = functools.partial(_dice_sums_label_kernel, tile_s=tile_s, n_per=n_per,
                               n_total=n_total, rem=rem, has_overflow=has_overflow)

    out = pl.pallas_call(
        kernel,
        out_shape=jax.ShapeDtypeStruct((n_splits, 3, B, C), jnp.float32),
        grid_spec=pltpu.PrefetchScalarGridSpec(
            num_scalar_prefetch=0,
            grid=(n_splits, n_per),
            in_specs=[pl.BlockSpec((B, C, tile_s), x_map),
                      pl.BlockSpec((B, tile_s), lab_map)],
            out_specs=pl.BlockSpec((1, 3, B, C), lambda p, k: (p, 0, 0, 0)),
            scratch_shapes=[pltpu.VMEM((B, C, _ACC_W), jnp.float32)] * 3,
        ),
        compiler_params=_compiler_params(),
    )(x3, labels2)

    sums = out.sum(axis=0)        # (3, B, C)
    return sums[0], sums[1], sums[2]


# ---------------------------------------------------------------------------
# Forward pass matching SoftDiceLoss.forward
# ---------------------------------------------------------------------------
def soft_dice_loss(x, y, loss_mask=None, batch_dice=False, do_bg=True,
                   smooth=1.0, apply_nonlinear=None):
    # TODO(synk): loss_mask path not implemented (module default is None).
    assert loss_mask is None
    if apply_nonlinear is not None:
        x = apply_nonlinear(x)

    B, C = x.shape[0], x.shape[1]
    S = 1
    for d in x.shape[2:]:
        S *= d

    if y.shape == x.shape:
        # TODO(synk): when C == 1 a (B,1,...) integer label map is indistinguishable
        # from soft labels by shape alone (same ambiguity as the PyTorch module).
        tp, sx, sy = _dice_sums_dense(x.reshape(B * C, S), y.reshape(B * C, S))
        tp = tp.reshape(B, C)
        sx = sx.reshape(B, C)
        sy = sy.reshape(B, C)
    else:
        # gt given as an integer label map ((B, spatial...) or (B, 1, spatial...)).
        tp, sx, sy = _dice_sums_from_labels(x.reshape(B, C, S), y.reshape(B, S))

    fp = sx - tp   # sum(x * (1 - y))
    fn = sy - tp   # sum((1 - x) * y)

    if batch_dice:  # axes = [0] + spatial -> additionally sum over batch
        tp = tp.sum(axis=0)
        fp = fp.sum(axis=0)
        fn = fn.sum(axis=0)

    nominator = 2.0 * tp + smooth
    denominator = 2.0 * tp + fp + fn + smooth
    dc = nominator / (denominator + 1e-8)

    if not do_bg:
        dc = dc[1:] if batch_dice else dc[:, 1:]

    return 1.0 - dc.mean()


def _reference_loss(x, y, batch_dice=False, do_bg=True, smooth=1.0):
    """Pure-JAX reference mirroring the PyTorch module (y same shape as x)."""
    axes = ([0] if batch_dice else []) + list(range(2, x.ndim))
    tp = jnp.sum(x * y, axis=tuple(axes))
    fp = jnp.sum(x * (1 - y), axis=tuple(axes))
    fn = jnp.sum((1 - x) * y, axis=tuple(axes))
    dc = (2 * tp + smooth) / (2 * tp + fp + fn + smooth + 1e-8)
    if not do_bg:
        dc = dc[1:] if batch_dice else dc[:, 1:]
    return 1.0 - dc.mean()


if __name__ == "__main__":
    key0, key1 = jax.random.split(jax.random.PRNGKey(0))

    def make_case(k, B, C, H, W):
        ka, kb = jax.random.split(k)
        x = jax.random.uniform(ka, (B, C, H, W), dtype=jnp.float32)
        labels = jax.random.randint(kb, (B, H, W), 0, C)
        y = jax.nn.one_hot(labels, C, axis=1, dtype=jnp.float32)
        return x, y, labels

    # Small case: B=2, C=4, 16x16 (single tile, partially-valid edge chunk).
    x, y, labels = make_case(key0, 2, 4, 16, 16)

    loss = jax.block_until_ready(soft_dice_loss(x, y))
    ref = _reference_loss(x, y)
    assert jnp.allclose(loss, ref, atol=1e-5, rtol=1e-5), (loss, ref)

    # Integer label-map ground truth (int8-streamed, one-hot fused in-kernel).
    loss_lab = jax.block_until_ready(soft_dice_loss(x, labels))
    assert jnp.allclose(loss_lab, ref, atol=1e-5, rtol=1e-5), (loss_lab, ref)

    # Flag variants.
    for bd, bg in ((True, True), (False, False), (True, False)):
        l = jax.block_until_ready(soft_dice_loss(x, y, batch_dice=bd, do_bg=bg))
        r = _reference_loss(x, y, batch_dice=bd, do_bg=bg)
        assert jnp.allclose(l, r, atol=1e-5, rtol=1e-5), (bd, bg, l, r)

    # Ragged multi-chunk case (S = 72*72 = 5184; 5184 % 512 = 64 -> partial chunk).
    x2, y2, labels2 = make_case(key1, 2, 3, 72, 72)
    r2 = _reference_loss(x2, y2)
    l2 = jax.block_until_ready(soft_dice_loss(x2, y2))
    assert jnp.allclose(l2, r2, atol=1e-4, rtol=1e-4), (l2, r2)
    l2_lab = jax.block_until_ready(soft_dice_loss(x2, labels2))
    assert jnp.allclose(l2_lab, r2, atol=1e-4, rtol=1e-4), (l2_lab, r2)

    # Force small tiles + a 2-way split to exercise multi-tile accumulation,
    # the parallel leading axis and the ragged edge on any chip.
    _FORCE_TILE_S, _FORCE_SPLITS = 1024, 2     # n_total=6, n_per=3, rem=64
    l3 = jax.block_until_ready(soft_dice_loss(x2, y2))
    assert jnp.allclose(l3, r2, atol=1e-4, rtol=1e-4), (l3, r2)
    l3_lab = jax.block_until_ready(soft_dice_loss(x2, labels2))
    assert jnp.allclose(l3_lab, r2, atol=1e-4, rtol=1e-4), (l3_lab, r2)

    # Force a grid with a clamped "overflow" tile that must be skipped.
    _FORCE_TILE_S, _FORCE_SPLITS = 2048, 2     # n_total=3, n_per=2 -> 1 overflow tile
    l4 = jax.block_until_ready(soft_dice_loss(x2, y2))
    assert jnp.allclose(l4, r2, atol=1e-4, rtol=1e-4), (l4, r2)
    l4_lab = jax.block_until_ready(soft_dice_loss(x2, labels2))
    assert jnp.allclose(l4_lab, r2, atol=1e-4, rtol=1e-4), (l4_lab, r2)

    _FORCE_TILE_S, _FORCE_SPLITS = None, None
    print("KERNEL_OK")
</pallas_src>

<mosaic_0001>
module attributes {stable_mosaic.version = 11 : i64} {
  func.func @_dice_sums_kernel(%arg0: i32, %arg1: i32, %arg2: memref<8x512xf32, #tpu.memory_space<vmem>>, %arg3: memref<8x512xf32, #tpu.memory_space<vmem>>, %arg4: memref<1x3x8x1xf32, #tpu.memory_space<vmem>>, %arg5: memref<8x512xf32, #tpu.memory_space<vmem>>, %arg6: memref<8x512xf32, #tpu.memory_space<vmem>>, %arg7: memref<8x512xf32, #tpu.memory_space<vmem>>) attributes {dimension_semantics = [#tpu.dimension_semantics<parallel>, #tpu.dimension_semantics<arbitrary>], iteration_bounds = array<i64: 1, 1>, scalar_prefetch = 0 : i64, scratch_operands = 3 : i64, tpu.core_type = #tpu.core_type<tc>, window_params = [{transform_indices = @transform_0, window_bounds = array<i64: 8, 512>}, {transform_indices = @transform_1, window_bounds = array<i64: 8, 512>}, {transform_indices = @transform_2, window_bounds = array<i64: 1, 3, 8, 1>}]} {
    %c0_i32 = arith.constant 0 : i32
    %0 = arith.cmpi eq, %arg1, %c0_i32 : i32
    %1 = arith.extui %0 : i1 to i32
    %c0_i32_0 = arith.constant 0 : i32
    %2 = arith.cmpi ne, %1, %c0_i32_0 : i32
    scf.if %2 {
      %cst = arith.constant 0.000000e+00 : f32
      %14 = vector.broadcast %cst : f32 to vector<8x512xf32>
      %c0 = arith.constant 0 : index
      %c0_7 = arith.constant 0 : index
      %15 = vector.load %arg5[%c0, %c0_7] : memref<8x512xf32, #tpu.memory_space<vmem>>, vector<8x512xf32>
      tpu.vector_store %arg5[%c0, %c0_7], %14 {strides = array<i32>} : memref<8x512xf32, #tpu.memory_space<vmem>>, vector<8x512xf32>,
      %cst_8 = arith.constant 0.000000e+00 : f32
      %16 = vector.broadcast %cst_8 : f32 to vector<8x512xf32>
      %c0_9 = arith.constant 0 : index
      %c0_10 = arith.constant 0 : index
      %17 = vector.load %arg6[%c0_9, %c0_10] : memref<8x512xf32, #tpu.memory_space<vmem>>, vector<8x512xf32>
      tpu.vector_store %arg6[%c0_9, %c0_10], %16 {strides = array<i32>} : memref<8x512xf32, #tpu.memory_space<vmem>>, vector<8x512xf32>,
      %cst_11 = arith.constant 0.000000e+00 : f32
      %18 = vector.broadcast %cst_11 : f32 to vector<8x512xf32>
      %c0_12 = arith.constant 0 : index
      %c0_13 = arith.constant 0 : index
      %19 = vector.load %arg7[%c0_12, %c0_13] : memref<8x512xf32, #tpu.memory_space<vmem>>, vector<8x512xf32>
      tpu.vector_store %arg7[%c0_12, %c0_13], %18 {strides = array<i32>} : memref<8x512xf32, #tpu.memory_space<vmem>>, vector<8x512xf32>,
    } else {
    }
    %c1_i32 = arith.constant 1 : i32
    %3 = arith.muli %arg0, %c1_i32 : i32
    %4 = arith.addi %3, %arg1 : i32
    %c0_i32_1 = arith.constant 0 : i32
    %5 = arith.cmpi eq, %4, %c0_i32_1 : i32
    %6 = arith.extui %5 : i1 to i32
    %c0_i32_2 = arith.constant 0 : i32
    %7 = arith.cmpi ne, %6, %c0_i32_2 : i32
    scf.if %7 {
      %c0 = arith.constant 0 : index
      %c0_7 = arith.constant 0 : index
      %14 = vector.load %arg5[%c0, %c0_7] : memref<8x512xf32, #tpu.memory_space<vmem>>, vector<8x512xf32>
      %c0_8 = arith.constant 0 : index
      %c0_9 = arith.constant 0 : index
      %15 = vector.load %arg6[%c0_8, %c0_9] : memref<8x512xf32, #tpu.memory_space<vmem>>, vector<8x512xf32>
      %c0_10 = arith.constant 0 : index
      %c0_11 = arith.constant 0 : index
      %16 = vector.load %arg7[%c0_10, %c0_11] : memref<8x512xf32, #tpu.memory_space<vmem>>, vector<8x512xf32>
      %c0_12 = arith.constant 0 : index
      %c0_13 = arith.constant 0 : index
      %17 = vector.load %arg2[%c0_12, %c0_13] : memref<8x512xf32, #tpu.memory_space<vmem>>, vector<8x512xf32>
      %c0_14 = arith.constant 0 : index
      %c0_15 = arith.constant 0 : index
      %18 = vector.load %arg3[%c0_14, %c0_15] : memref<8x512xf32, #tpu.memory_space<vmem>>, vector<8x512xf32>
      %19 = tpu.iota {dimensions = array<i32: 1>} : vector<8x512xi32>
      %c0_i32_16 = arith.constant 0 : i32
      %20 = vector.broadcast %c0_i32_16 : i32 to vector<8x512xi32>
      %21 = arith.addi %19, %20 : vector<8x512xi32>
      %c256_i32 = arith.constant 256 : i32
      %22 = vector.broadcast %c256_i32 : i32 to vector<8x512xi32>
      %23 = arith.cmpi slt, %21, %22 : vector<8x512xi32>
      %cst = arith.constant 0.000000e+00 : f32
      %24 = vector.broadcast %cst : f32 to vector<8x512xf32>
      %25 = arith.select %23, %17, %24 : vector<8x512xi1>, vector<8x512xf32>
      %cst_17 = arith.constant 0.000000e+00 : f32
      %26 = vector.broadcast %cst_17 : f32 to vector<8x512xf32>
      %27 = arith.select %23, %18, %26 : vector<8x512xi1>, vector<8x512xf32>
      %28 = arith.mulf %25, %27 : vector<8x512xf32>
      %29 = arith.addf %14, %28 : vector<8x512xf32>
      %30 = arith.addf %15, %25 : vector<8x512xf32>
      %31 = arith.addf %16, %27 : vector<8x512xf32>
      %c0_18 = arith.constant 0 : index
      %c0_19 = arith.constant 0 : index
      %32 = vector.load %arg5[%c0_18, %c0_19] : memref<8x512xf32, #tpu.memory_space<vmem>>, vector<8x512xf32>
      tpu.vector_store %arg5[%c0_18, %c0_19], %29 {strides = array<i32>} : memref<8x512xf32, #tpu.memory_space<vmem>>, vector<8x512xf32>,
      %c0_20 = arith.constant 0 : index
      %c0_21 = arith.constant 0 : index
      %33 = vector.load %arg6[%c0_20, %c0_21] : memref<8x512xf32, #tpu.memory_space<vmem>>, vector<8x512xf32>
      tpu.vector_store %arg6[%c0_20, %c0_21], %30 {strides = array<i32>} : memref<8x512xf32, #tpu.memory_space<vmem>>, vector<8x512xf32>,
      %c0_22 = arith.constant 0 : index
      %c0_23 = arith.constant 0 : index
      %34 = vector.load %arg7[%c0_22, %c0_23] : memref<8x512xf32, #tpu.memory_space<vmem>>, vector<8x512xf32>
      tpu.vector_store %arg7[%c0_22, %c0_23], %31 {strides = array<i32>} : memref<8x512xf32, #tpu.memory_space<vmem>>, vector<8x512xf32>,
    } else {
    }
    %c0_i32_3 = arith.constant 0 : i32
    %8 = arith.cmpi slt, %4, %c0_i32_3 : i32
    %9 = arith.extui %8 : i1 to i32
    %c0_i32_4 = arith.constant 0 : i32
    %10 = arith.cmpi ne, %9, %c0_i32_4 : i32
    scf.if %10 {
      %c0 = arith.constant 0 : index
      %c0_7 = arith.constant 0 : index
      %14 = vector.load %arg5[%c0, %c0_7] : memref<8x512xf32, #tpu.memory_space<vmem>>, vector<8x512xf32>
      %c0_8 = arith.constant 0 : index
      %c0_9 = arith.constant 0 : index
      %15 = vector.load %arg6[%c0_8, %c0_9] : memref<8x512xf32, #tpu.memory_space<vmem>>, vector<8x512xf32>
      %c0_10 = arith.constant 0 : index
      %c0_11 = arith.constant 0 : index
      %16 = vector.load %arg7[%c0_10, %c0_11] : memref<8x512xf32, #tpu.memory_space<vmem>>, vector<8x512xf32>
      %c0_12 = arith.constant 0 : index
      %c0_13 = arith.constant 0 : index
      %17 = vector.load %arg2[%c0_12, %c0_13] : memref<8x512xf32, #tpu.memory_space<vmem>>, vector<8x512xf32>
      %c0_14 = arith.constant 0 : index
      %c0_15 = arith.constant 0 : index
      %18 = vector.load %arg3[%c0_14, %c0_15] : memref<8x512xf32, #tpu.memory_space<vmem>>, vector<8x512xf32>
      %19 = arith.mulf %17, %18 : vector<8x512xf32>
      %20 = arith.addf %14, %19 : vector<8x512xf32>
      %21 = arith.addf %15, %17 : vector<8x512xf32>
      %22 = arith.addf %16, %18 : vector<8x512xf32>
      %c0_16 = arith.constant 0 : index
      %c0_17 = arith.constant 0 : index
      %23 = vector.load %arg5[%c0_16, %c0_17] : memref<8x512xf32, #tpu.memory_space<vmem>>, vector<8x512xf32>
      tpu.vector_store %arg5[%c0_16, %c0_17], %20 {strides = array<i32>} : memref<8x512xf32, #tpu.memory_space<vmem>>, vector<8x512xf32>,
      %c0_18 = arith.constant 0 : index
      %c0_19 = arith.constant 0 : index
      %24 = vector.load %arg6[%c0_18, %c0_19] : memref<8x512xf32, #tpu.memory_space<vmem>>, vector<8x512xf32>
      tpu.vector_store %arg6[%c0_18, %c0_19], %21 {strides = array<i32>} : memref<8x512xf32, #tpu.memory_space<vmem>>, vector<8x512xf32>,
      %c0_20 = arith.constant 0 : index
      %c0_21 = arith.constant 0 : index
      %25 = vector.load %arg7[%c0_20, %c0_21] : memref<8x512xf32, #tpu.memory_space<vmem>>, vector<8x512xf32>
      tpu.vector_store %arg7[%c0_20, %c0_21], %22 {strides = array<i32>} : memref<8x512xf32, #tpu.memory_space<vmem>>, vector<8x512xf32>,
    } else {
    }
    %c0_i32_5 = arith.constant 0 : i32
    %11 = arith.cmpi eq, %arg1, %c0_i32_5 : i32
    %12 = arith.extui %11 : i1 to i32
    %c0_i32_6 = arith.constant 0 : i32
    %13 = arith.cmpi ne, %12, %c0_i32_6 : i32
    scf.if %13 {
      %c0 = arith.constant 0 : index
      %c0_7 = arith.constant 0 : index
      %14 = vector.load %arg5[%c0, %c0_7] : memref<8x512xf32, #tpu.memory_space<vmem>>, vector<8x512xf32>
      %cst = arith.constant dense<0.000000e+00> : vector<8xf32>
      %15 = vector.multi_reduction <add>, %14, %cst [1] : vector<8x512xf32> to vector<8xf32>
      %16 = vector.shape_cast %15 : vector<8xf32> to vector<8x1xf32>
      %c0_8 = arith.constant 0 : index
      %c0_9 = arith.constant 0 : index
      %c0_10 = arith.constant 0 : index
      %c0_11 = arith.constant 0 : index
      %17 = vector.load %arg4[%c0_8, %c0_9, %c0_10, %c0_11] : memref<1x3x8x1xf32, #tpu.memory_space<vmem>>, vector<1x1x8x1xf32>
      %18 = vector.shape_cast %17 : vector<1x1x8x1xf32> to vector<8x1xf32>
      %19 = vector.shape_cast %16 : vector<8x1xf32> to vector<1x1x8x1xf32>
      tpu.vector_store %arg4[%c0_8, %c0_9, %c0_10, %c0_11], %19 {strides = array<i32>} : memref<1x3x8x1xf32, #tpu.memory_space<vmem>>, vector<1x1x8x1xf32>,
      %c0_12 = arith.constant 0 : index
      %c0_13 = arith.constant 0 : index
      %20 = vector.load %arg6[%c0_12, %c0_13] : memref<8x512xf32, #tpu.memory_space<vmem>>, vector<8x512xf32>
      %cst_14 = arith.constant dense<0.000000e+00> : vector<8xf32>
      %21 = vector.multi_reduction <add>, %20, %cst_14 [1] : vector<8x512xf32> to vector<8xf32>
      %22 = vector.shape_cast %21 : vector<8xf32> to vector<8x1xf32>
      %c0_15 = arith.constant 0 : index
      %c1 = arith.constant 1 : index
      %c0_16 = arith.constant 0 : index
      %c0_17 = arith.constant 0 : index
      %23 = vector.load %arg4[%c0_15, %c1, %c0_16, %c0_17] : memref<1x3x8x1xf32, #tpu.memory_space<vmem>>, vector<1x1x8x1xf32>
      %24 = vector.shape_cast %23 : vector<1x1x8x1xf32> to vector<8x1xf32>
      %25 = vector.shape_cast %22 : vector<8x1xf32> to vector<1x1x8x1xf32>
      tpu.vector_store %arg4[%c0_15, %c1, %c0_16, %c0_17], %25 {strides = array<i32>} : memref<1x3x8x1xf32, #tpu.memory_space<vmem>>, vector<1x1x8x1xf32>,
      %c0_18 = arith.constant 0 : index
      %c0_19 = arith.constant 0 : index
      %26 = vector.load %arg7[%c0_18, %c0_19] : memref<8x512xf32, #tpu.memory_space<vmem>>, vector<8x512xf32>
      %cst_20 = arith.constant dense<0.000000e+00> : vector<8xf32>
      %27 = vector.multi_reduction <add>, %26, %cst_20 [1] : vector<8x512xf32> to vector<8xf32>
      %28 = vector.shape_cast %27 : vector<8xf32> to vector<8x1xf32>
      %c0_21 = arith.constant 0 : index
      %c2 = arith.constant 2 : index
      %c0_22 = arith.constant 0 : index
      %c0_23 = arith.constant 0 : index
      %29 = vector.load %arg4[%c0_21, %c2, %c0_22, %c0_23] : memref<1x3x8x1xf32, #tpu.memory_space<vmem>>, vector<1x1x8x1xf32>
      %30 = vector.shape_cast %29 : vector<1x1x8x1xf32> to vector<8x1xf32>
      %31 = vector.shape_cast %28 : vector<8x1xf32> to vector<1x1x8x1xf32>
      tpu.vector_store %arg4[%c0_21, %c2, %c0_22, %c0_23], %31 {strides = array<i32>} : memref<1x3x8x1xf32, #tpu.memory_space<vmem>>, vector<1x1x8x1xf32>,
    } else {
    }
    return
  }
  func.func @transform_0(%arg0: i32, %arg1: i32) -> (i32, i32) {
    %c1_i32 = arith.constant 1 : i32
    %0 = arith.muli %arg0, %c1_i32 : i32
    %1 = arith.addi %0, %arg1 : i32
    %c0_i32 = arith.constant 0 : i32
    %2 = arith.minsi %1, %c0_i32 : i32
    %c0_i32_0 = arith.constant 0 : i32
    %c0_i32_1 = arith.constant 0 : i32
    return %c0_i32_0, %2 : i32, i32
  }
  func.func @transform_1(%arg0: i32, %arg1: i32) -> (i32, i32) {
    %c1_i32 = arith.constant 1 : i32
    %0 = arith.muli %arg0, %c1_i32 : i32
    %1 = arith.addi %0, %arg1 : i32
    %c0_i32 = arith.constant 0 : i32
    %2 = arith.minsi %1, %c0_i32 : i32
    %c0_i32_0 = arith.constant 0 : i32
    %c0_i32_1 = arith.constant 0 : i32
    return %c0_i32_0, %2 : i32, i32
  }
  func.func @transform_2(%arg0: i32, %arg1: i32) -> (i32, i32, i32, i32) {
    %c0_i32 = arith.constant 0 : i32
    %c0_i32_0 = arith.constant 0 : i32
    %c0_i32_1 = arith.constant 0 : i32
    %c0_i32_2 = arith.constant 0 : i32
    return %arg0, %c0_i32, %c0_i32_0, %c0_i32_1 : i32, i32, i32, i32
  }
}

</mosaic_0001>

<llo_original>
// kernel: tpu_custom_call.1
$region0: #{tpu_custom_call.1}
  #allocation0 [shape = 'u32[]', space=smem, size = 0x4, offset = 0x4, fixed_abs, tag = 'smem constant byte address 0x4 - core index']
  #allocation1 [shape = 'u32[144,128]{1,0:T(1,128)}', space=vmem, size = 0x12000, scoped, tag = 'internal scratch']
  #allocation2 [shape = 'f32[8,512]{1,0:T(8,128)}', space=vmem, size = 0x4000, scoped, tag = 'scratch operand']
  #allocation3 [shape = 'f32[8,512]{1,0:T(8,128)}', space=vmem, size = 0x4000, scoped, tag = 'scratch operand']
  #allocation4 [shape = 'f32[8,512]{1,0:T(8,128)}', space=vmem, size = 0x4000, scoped, tag = 'scratch operand']
  %s0 = inlined_call_operand.hbm [shape: f32[8,256], index: 0, kind: input, shape index: {}]
  %s1 = inlined_call_operand.hbm [shape: f32[8,256], index: 1, kind: input, shape index: {}]
  %s2 = inlined_call_operand.hbm [shape: f32[1,3,8,1], index: 2, kind: output, shape index: {}]
  %s3 = sld [smem:[#allocation0]]
  $region42: #{tpu_custom_call.1} parent=0
    _
  %s5 = ssub.s32 1, %s3
  %s6 = scalar_select 0, %s5, %s3
  $region1: #{tpu_custom_call.1} parent=0
    #allocation5 [shape = 'u8[16384]{0}', space=vmem, size = 0x4000, scoped, tag = 'input window, operand 0, single buffered']
    #allocation6 [shape = 's32[1]{0}', space=sflag, size = 0x4, scoped, tag = 'scoped memory for tpu_custom_call.1']
    #allocation7 [shape = 's32[1]{0}', space=sflag, size = 0x4, scoped, tag = 'scoped memory for tpu_custom_call.1']
    #allocation8 [shape = 'u8[16384]{0}', space=vmem, size = 0x4000, scoped, tag = 'input window, operand 1, single buffered']
    #allocation9 [shape = 's32[1]{0}', space=sflag, size = 0x4, scoped, tag = 'scoped memory for tpu_custom_call.1']
    #allocation10 [shape = 'u8[12288]{0}', space=vmem, size = 0x3000, scoped, tag = 'output window, operand 0, single buffered']
    %7 = vsyncpa [#allocation6], 0
    %8 = vsyncpa [#allocation9], 0
    %9 = vsyncpa [#allocation7], 0
    // Predicated region
    $region2: #{tpu_custom_call.1} parent=1 // pred_check
      _
    $region3: #{tpu_custom_call.1} parent=1 // pred_check_branch
      %11 = sbr.rel (0) target = $region5
    $region4: #{tpu_custom_call.1} parent=1 // pred_region
      %s12 = sadd.s32 0, 0
      %p13 = scmp.lt.s32.totalorder %s12, 0
      %s14 = scalar_select %p13, %s12, 0
      %s15 = smul.u32 4, %s14
      %s16 = ssub.s32 2, %s15
      %s17 = smul.u32 128, %s16
      %s19 = ssub.s32 512, %s17
      %20 = vsyncadd [#allocation6], %s19
      %p21 = scmp.ne.s32.totalorder 0, %s17
      %s22 = smul.addr %s15, 128
      %s23 = scalar_lea.hbm %s0, %s22
      %s24 = smul.u32 %s16, 8
      %s25 = sshll.u32 %s24, 4
      %s26 = sshll.u32 [#allocation5], 4
      %s27 = int_to_ptr.vmem [resolvable:$true] %s26
      %29 = dma.hbm_to_vmem [thread:$0]  (%p21), %s23, %s25, %s27, [#allocation6]
    $region5: #{tpu_custom_call.1} parent=1 // pred_fallthru
      _
    // Predicated region
    $region6: #{tpu_custom_call.1} parent=1 // pred_check
      _
    $region7: #{tpu_custom_call.1} parent=1 // pred_check_branch
      %31 = sbr.rel (0) target = $region9
    $region8: #{tpu_custom_call.1} parent=1 // pred_region
      %s32 = sadd.s32 0, 0
      %p33 = scmp.lt.s32.totalorder %s32, 0
      %s34 = scalar_select %p33, %s32, 0
      %s35 = smul.u32 4, %s34
      %s36 = ssub.s32 2, %s35
      %s37 = smul.u32 128, %s36
      %s39 = ssub.s32 512, %s37
      %40 = vsyncadd [#allocation9], %s39
      %p41 = scmp.ne.s32.totalorder 0, %s37
      %s42 = smul.addr %s35, 128
      %s43 = scalar_lea.hbm %s1, %s42
      %s44 = smul.u32 %s36, 8
      %s45 = sshll.u32 %s44, 4
      %s46 = sshll.u32 [#allocation8], 4
      %s47 = int_to_ptr.vmem [resolvable:$true] %s46
      %49 = dma.hbm_to_vmem [thread:$0]  (%p41), %s43, %s45, %s47, [#allocation9]
    $region9: #{tpu_custom_call.1} parent=1 // pred_fallthru
      _
    // Predicated region
    $region10: #{tpu_custom_call.1} parent=1 // pred_check
      _
    $region11: #{tpu_custom_call.1} parent=1 // pred_check_branch
      %51 = sbr.rel (0) target = $region13
    $region12: #{tpu_custom_call.1} parent=1 // pred_region
      %52 = dma.done [#allocation6], 512
    $region13: #{tpu_custom_call.1} parent=1 // pred_fallthru
      _
    // Predicated region
    $region14: #{tpu_custom_call.1} parent=1 // pred_check
      _
    $region15: #{tpu_custom_call.1} parent=1 // pred_check_branch
      %54 = sbr.rel (0) target = $region17
    $region16: #{tpu_custom_call.1} parent=1 // pred_region
      %55 = dma.done [#allocation9], 512
    $region17: #{tpu_custom_call.1} parent=1 // pred_fallthru
      _
    %s56 = sadd.s32 0, 0
    %p57 = scmp.lt.s32.totalorder %s56, 0
    %s58 = scalar_select %p57, %s56, 0
    %s59 = smul.u32 4, %s58
    %s60 = ssub.s32 2, %s59
    %s61 = smul.u32 128, %s60
    %s62 = sadd.s32 0, 0
    %p63 = scmp.lt.s32.totalorder %s62, 0
    %s64 = scalar_select %p63, %s62, 0
    %s65 = smul.u32 4, %s64
    %s66 = ssub.s32 2, %s65
    %s67 = smul.u32 128, %s66
    %p68 = scmp.eq.s32.totalorder 0, 0
    // Predicated region
    $region18: #{tpu_custom_call.1} parent=1 // pred_check
      %p69 = pneg %p68
    $region19: #{tpu_custom_call.1} parent=1 // pred_check_branch
      %71 = sbr.rel (%p69) target = $region21
    $region20: #{tpu_custom_call.1} parent=1 // pred_region
      %72 = vst [vmem:[#allocation2] sm:$0xff] 0.0
      %73 = vst [vmem:[#allocation2 + $0x8] sm:$0xff] 0.0
      %74 = vst [vmem:[#allocation2 + $0x10] sm:$0xff] 0.0
      %75 = vst [vmem:[#allocation2 + $0x18] sm:$0xff] 0.0
      %76 = vst [vmem:[#allocation3] sm:$0xff] 0.0
      %77 = vst [vmem:[#allocation3 + $0x8] sm:$0xff] 0.0
      %78 = vst [vmem:[#allocation3 + $0x10] sm:$0xff] 0.0
      %79 = vst [vmem:[#allocation3 + $0x18] sm:$0xff] 0.0
      %80 = vst [vmem:[#allocation4] sm:$0xff] 0.0
      %81 = vst [vmem:[#allocation4 + $0x8] sm:$0xff] 0.0
      %82 = vst [vmem:[#allocation4 + $0x10] sm:$0xff] 0.0
      %83 = vst [vmem:[#allocation4 + $0x18] sm:$0xff] 0.0
    $region21: #{tpu_custom_call.1} parent=1 // pred_fallthru
      _
    %s84 = sadd.s32 0, 0
    %p85 = scmp.eq.s32.totalorder %s84, 0
    // Predicated region
    $region22: #{tpu_custom_call.1} parent=1 // pred_check
      %p86 = pneg %p85
    $region23: #{tpu_custom_call.1} parent=1 // pred_check_branch
      %88 = sbr.rel (%p86) target = $region25
    $region24: #{tpu_custom_call.1} parent=1 // pred_region
      %v89 = vld [vmem:[#allocation2] sm:$0xff]
      %v90 = vld [vmem:[#allocation2 + $0x8] sm:$0xff]
      %v91 = vld [vmem:[#allocation2 + $0x10] sm:$0xff]
      %v92 = vld [vmem:[#allocation2 + $0x18] sm:$0xff]
      %v93 = vld [vmem:[#allocation3] sm:$0xff]
      %v94 = vld [vmem:[#allocation3 + $0x8] sm:$0xff]
      %v95 = vld [vmem:[#allocation3 + $0x10] sm:$0xff]
      %v96 = vld [vmem:[#allocation3 + $0x18] sm:$0xff]
      %v97 = vld [vmem:[#allocation4] sm:$0xff]
      %v98 = vld [vmem:[#allocation4 + $0x8] sm:$0xff]
      %v99 = vld [vmem:[#allocation4 + $0x10] sm:$0xff]
      %v100 = vld [vmem:[#allocation4 + $0x18] sm:$0xff]
      %v101 = vld [vmem:[#allocation5] sm:$0xff]
      %v102 = vld [vmem:[#allocation5 + $0x8] sm:$0xff]
      %v103 = vld [vmem:[#allocation5 + $0x10] sm:$0xff]
      %v104 = vld [vmem:[#allocation5 + $0x18] sm:$0xff]
      %v105 = vld [vmem:[#allocation8] sm:$0xff]
      %v106 = vld [vmem:[#allocation8 + $0x8] sm:$0xff]
      %v107 = vld [vmem:[#allocation8 + $0x10] sm:$0xff]
      %v108 = vld [vmem:[#allocation8 + $0x18] sm:$0xff]
      %v109 = vlaneseq
      %v110 = vand.u32 %v109, 127
      %v111 = vadd.s32 %v110, 128
      %v112 = vadd.s32 %v110, 256
      %v113 = vadd.s32 %v110, 384
      %vm114 = vcmp.lt.s32.totalorder %v110, 256
      %vm115 = vcmp.lt.s32.totalorder %v111, 256
      %vm116 = vcmp.lt.s32.totalorder %v112, 256
      %vm117 = vcmp.lt.s32.totalorder %v113, 256
      %v118 = vsel %vm114, %v101, 0.0
      %v119 = vsel %vm115, %v102, 0.0
      %v120 = vsel %vm116, %v103, 0.0
      %v121 = vsel %vm117, %v104, 0.0
      %v122 = vsel %vm114, %v105, 0.0
      %v123 = vsel %vm115, %v106, 0.0
      %v124 = vsel %vm116, %v107, 0.0
      %v125 = vsel %vm117, %v108, 0.0
      %v126 = vmul.f32 %v118, %v122
      %v127 = vmul.f32 %v119, %v123
      %v128 = vmul.f32 %v120, %v124
      %v129 = vmul.f32 %v121, %v125
      %v130 = vadd.f32 %v89, %v126
      %v131 = vadd.f32 %v90, %v127
      %v132 = vadd.f32 %v91, %v128
      %v133 = vadd.f32 %v92, %v129
      %v134 = vadd.f32 %v93, %v118
      %v135 = vadd.f32 %v94, %v119
      %v136 = vadd.f32 %v95, %v120
      %v137 = vadd.f32 %v96, %v121
      %v138 = vadd.f32 %v97, %v122
      %v139 = vadd.f32 %v98, %v123
      %v140 = vadd.f32 %v99, %v124
      %v141 = vadd.f32 %v100, %v125
      %142 = vst [vmem:[#allocation2] sm:$0xff] %v130
      %143 = vst [vmem:[#allocation2 + $0x8] sm:$0xff] %v131
      %144 = vst [vmem:[#allocation2 + $0x10] sm:$0xff] %v132
      %145 = vst [vmem:[#allocation2 + $0x18] sm:$0xff] %v133
      %146 = vst [vmem:[#allocation3] sm:$0xff] %v134
      %147 = vst [vmem:[#allocation3 + $0x8] sm:$0xff] %v135
      %148 = vst [vmem:[#allocation3 + $0x10] sm:$0xff] %v136
      %149 = vst [vmem:[#allocation3 + $0x18] sm:$0xff] %v137
      %150 = vst [vmem:[#allocation4] sm:$0xff] %v138
      %151 = vst [vmem:[#allocation4 + $0x8] sm:$0xff] %v139
      %152 = vst [vmem:[#allocation4 + $0x10] sm:$0xff] %v140
      %153 = vst [vmem:[#allocation4 + $0x18] sm:$0xff] %v141
    $region25: #{tpu_custom_call.1} parent=1 // pred_fallthru
      _
    %p154 = scmp.lt.s32.totalorder %s84, 0
    // Predicated region
    $region26: #{tpu_custom_call.1} parent=1 // pred_check
      %p155 = pneg %p154
    $region27: #{tpu_custom_call.1} parent=1 // pred_check_branch
      %157 = sbr.rel (%p155) target = $region29
    $region28: #{tpu_custom_call.1} parent=1 // pred_region
      %v158 = vld [vmem:[#allocation2] sm:$0xff]
      %v159 = vld [vmem:[#allocation2 + $0x8] sm:$0xff]
      %v160 = vld [vmem:[#allocation2 + $0x10] sm:$0xff]
      %v161 = vld [vmem:[#allocation2 + $0x18] sm:$0xff]
      %v162 = vld [vmem:[#allocation3] sm:$0xff]
      %v163 = vld [vmem:[#allocation3 + $0x8] sm:$0xff]
      %v164 = vld [vmem:[#allocation3 + $0x10] sm:$0xff]
      %v165 = vld [vmem:[#allocation3 + $0x18] sm:$0xff]
      %v166 = vld [vmem:[#allocation4] sm:$0xff]
      %v167 = vld [vmem:[#allocation4 + $0x8] sm:$0xff]
      %v168 = vld [vmem:[#allocation4 + $0x10] sm:$0xff]
      %v169 = vld [vmem:[#allocation4 + $0x18] sm:$0xff]
      %v170 = vld [vmem:[#allocation5] sm:$0xff]
      %v171 = vld [vmem:[#allocation5 + $0x8] sm:$0xff]
      %v172 = vld [vmem:[#allocation5 + $0x10] sm:$0xff]
      %v173 = vld [vmem:[#allocation5 + $0x18] sm:$0xff]
      %v174 = vld [vmem:[#allocation8] sm:$0xff]
      %v175 = vld [vmem:[#allocation8 + $0x8] sm:$0xff]
      %v176 = vld [vmem:[#allocation8 + $0x10] sm:$0xff]
      %v177 = vld [vmem:[#allocation8 + $0x18] sm:$0xff]
      %v178 = vmul.f32 %v170, %v174
      %v179 = vmul.f32 %v171, %v175
      %v180 = vmul.f32 %v172, %v176
      %v181 = vmul.f32 %v173, %v177
      %v182 = vadd.f32 %v158, %v178
      %v183 = vadd.f32 %v159, %v179
      %v184 = vadd.f32 %v160, %v180
      %v185 = vadd.f32 %v161, %v181
      %v186 = vadd.f32 %v162, %v170
      %v187 = vadd.f32 %v163, %v171
      %v188 = vadd.f32 %v164, %v172
      %v189 = vadd.f32 %v165, %v173
      %v190 = vadd.f32 %v166, %v174
      %v191 = vadd.f32 %v167, %v175
      %v192 = vadd.f32 %v168, %v176
      %v193 = vadd.f32 %v169, %v177
      %194 = vst [vmem:[#allocation2] sm:$0xff] %v182
      %195 = vst [vmem:[#allocation2 + $0x8] sm:$0xff] %v183
      %196 = vst [vmem:[#allocation2 + $0x10] sm:$0xff] %v184
      %197 = vst [vmem:[#allocation2 + $0x18] sm:$0xff] %v185
      %198 = vst [vmem:[#allocation3] sm:$0xff] %v186
      %199 = vst [vmem:[#allocation3 + $0x8] sm:$0xff] %v187
      %200 = vst [vmem:[#allocation3 + $0x10] sm:$0xff] %v188
      %201 = vst [vmem:[#allocation3 + $0x18] sm:$0xff] %v189
      %202 = vst [vmem:[#allocation4] sm:$0xff] %v190
      %203 = vst [vmem:[#allocation4 + $0x8] sm:$0xff] %v191
      %204 = vst [vmem:[#allocation4 + $0x10] sm:$0xff] %v192
      %205 = vst [vmem:[#allocation4 + $0x18] sm:$0xff] %v193
    $region29: #{tpu_custom_call.1} parent=1 // pred_fallthru
      _
    // Predicated region
    $region30: #{tpu_custom_call.1} parent=1 // pred_check
      %p206 = pneg %p68
    $region31: #{tpu_custom_call.1} parent=1 // pred_check_branch
      %208 = sbr.rel (%p206) target = $region33
    $region32: #{tpu_custom_call.1} parent=1 // pred_region
      %v209 = vld [vmem:[#allocation2] sm:$0xff]
      %v210 = vld [vmem:[#allocation2 + $0x8] sm:$0xff]
      %v211 = vld [vmem:[#allocation2 + $0x10] sm:$0xff]
      %v212 = vld [vmem:[#allocation2 + $0x18] sm:$0xff]
      %v213 = vadd.f32 %v209, %v210
      %v214 = vadd.f32 %v213, %v211
      %v215 = vadd.f32 %v214, %v212
      %216 = vadd.xlane.f32.xlu0 %v215
      %v217 = vpop.xlane.xlu0 %216
      %vm218 = vcmask 7168
      %219 = vst.msk [vmem:[#allocation10] sm:$0xff] %vm218, %v217
      %v220 = vld [vmem:[#allocation3] sm:$0xff]
      %v221 = vld [vmem:[#allocation3 + $0x8] sm:$0xff]
      %v222 = vld [vmem:[#allocation3 + $0x10] sm:$0xff]
      %v223 = vld [vmem:[#allocation3 + $0x18] sm:$0xff]
      %v224 = vadd.f32 %v220, %v221
      %v225 = vadd.f32 %v224, %v222
      %v226 = vadd.f32 %v225, %v223
      %227 = vadd.xlane.f32.xlu0 %v226
      %v228 = vpop.xlane.xlu0 %227
      %s229 = scalar_lea.vmem [#allocation10], 8
      %230 = vst.msk [vmem:[%s229] sm:$0xff] %vm218, %v228
      %v231 = vld [vmem:[#allocation4] sm:$0xff]
      %v232 = vld [vmem:[#allocation4 + $0x8] sm:$0xff]
      %v233 = vld [vmem:[#allocation4 + $0x10] sm:$0xff]
      %v234 = vld [vmem:[#allocation4 + $0x18] sm:$0xff]
      %v235 = vadd.f32 %v231, %v232
      %v236 = vadd.f32 %v235, %v233
      %v237 = vadd.f32 %v236, %v234
      %238 = vadd.xlane.f32.xlu0 %v237
      %v239 = vpop.xlane.xlu0 %238
      %s240 = scalar_lea.vmem [#allocation10], 16
      %241 = vst.msk [vmem:[%s240] sm:$0xff] %vm218, %v239
    $region33: #{tpu_custom_call.1} parent=1 // pred_fallthru
      _
    // Predicated region
    $region34: #{tpu_custom_call.1} parent=1 // pred_check
      _
    $region35: #{tpu_custom_call.1} parent=1 // pred_check_branch
      %243 = sbr.rel (0) target = $region37
    $region36: #{tpu_custom_call.1} parent=1 // pred_region
      %s245 = ssub.s32 384, 384
      %246 = vsyncadd [#allocation7], %s245
      %s247 = sshll.u32 [#allocation10], 4
      %s248 = int_to_ptr.vmem [resolvable:$true] %s247
      %253 = dma.vmem_to_hbm [thread:$0]  %s248, 384, %s2, [#allocation7], 128, 128, 8
    $region37: #{tpu_custom_call.1} parent=1 // pred_fallthru
      _
    // Predicated region
    $region38: #{tpu_custom_call.1} parent=1 // pred_check
      _
    $region39: #{tpu_custom_call.1} parent=1 // pred_check_branch
      %255 = sbr.rel (0) target = $region41
    $region40: #{tpu_custom_call.1} parent=1 // pred_region
      %256 = dma.done [#allocation7], 384
    $region41: #{tpu_custom_call.1} parent=1 // pred_fallthru
      _
    %257 = vsyncpa [#allocation6], 1
    %258 = vsyncpa [#allocation9], 1
    %259 = vsyncpa [#allocation7], 1

</llo_original>
